<compile_context>
chip_gen: v7x
topology: tpu7x:2x2x1
jax: 0.10.0
libtpu: 0.0.40
codegen_flags: <defaults>
</compile_context>

<pallas_src>
import jax
import jax.numpy as jnp
import numpy as np
from jax import lax
from jax.experimental import pallas as pl
from jax.experimental.pallas import tpu as pltpu

INK_WEIGHT = 10.0
BACKGROUND_WEIGHT = 1.0
SMOOTH_NR = 1e-5
SMOOTH_DR = 1e-5

_LANE = 128
_SUBLANE = 8
_TARGET_BLOCK_BYTES = 4 << 20   # combined (both inputs) HBM bytes per grid step


def _choose_row_tile(r_arr, channels, itemsizes):
    """Rows (of 128 pixels) per grid step, sized from the real input itemsizes."""
    row_bytes = channels * _LANE * sum(itemsizes)
    rt = _TARGET_BLOCK_BYTES // max(row_bytes, 1)
    rt = max(_SUBLANE, (rt // _SUBLANE) * _SUBLANE)
    if rt >= 32:                       # keep packed-dtype sublane tiling native
        rt = (rt // 32) * 32
    r_cap = (r_arr // _SUBLANE) * _SUBLANE   # never exceed the array's row extent
    return max(_SUBLANE, min(rt, r_cap))


def _make_kernel(C, RT, NRH, NR, HW, need_mask, ink_weight, background_weight):
    dw = ink_weight - background_weight
    bg = background_weight

    def fold(t):
        # (C, RT, 128) -> (C, 8, 128) with vector adds only (tile-aligned split).
        if RT == _SUBLANE:
            return t
        return t.reshape(C, RT // _SUBLANE, _SUBLANE, _LANE).sum(axis=1)

    def kernel(x_ref, y_ref, out_ref):
        r = pl.program_id(2)

        @pl.when(r == 0)
        def _():
            out_ref[...] = jnp.zeros_like(out_ref)

        xv = x_ref[0].astype(jnp.float32)   # (C, RT, 128) logits (cast in-kernel)
        yv = y_ref[0].astype(jnp.float32)   # (C, RT, 128) labels (cast in-kernel)

        if need_mask:
            # Mask the partial last row-tile (and any wrapper lane-pad / OOB rows):
            # element (row, lane) of logical tile t has flat pixel index
            # (t*RT + row)*128 + lane; valid iff < HW.
            tile = pl.program_id(1) * NRH + r
            rows = lax.broadcasted_iota(jnp.int32, (RT, _LANE), 0)
            lanes = lax.broadcasted_iota(jnp.int32, (RT, _LANE), 1)
            flat = (tile * RT + rows) * _LANE + lanes
            valid = (flat < HW)[None, :, :]
            xv = jnp.where(valid, xv, 0.0)
            yv = jnp.where(valid, yv, 0.0)

        # ---- weighted BCE-with-logits (elementwise, numerically stable form) ----
        w_ce = yv * dw + bg
        ce_elem = (jnp.maximum(xv, 0.0) - xv * yv
                   + jnp.log1p(jnp.exp(-jnp.abs(xv))))
        ce_contrib = w_ce * ce_elem
        if need_mask:
            # masked (x=0, y=0) elements would otherwise contribute bg*log(2)
            ce_contrib = jnp.where(valid, ce_contrib, 0.0)

        # ---- accumulate lane-dense partials into the single resident output ----
        out_ref[0, 0, 0:C] += fold(ce_contrib)        # weighted CE partials
        out_ref[0, 0, C:2 * C] += fold(xv * yv)       # intersection partials
        out_ref[0, 0, 2 * C:3 * C] += fold(yv)        # ground_o partials
        out_ref[0, 0, 3 * C:4 * C] += fold(xv)        # pred_o partials

    return kernel


def weighted_dice_ce_loss(logits, labels,
                          ink_weight=INK_WEIGHT,
                          background_weight=BACKGROUND_WEIGHT,
                          smooth_nr=SMOOTH_NR,
                          smooth_dr=SMOOTH_DR):
    """Forward pass of CustomWeightedDiceCELoss -> scalar float32 loss.

    Pass logits/labels in their native dtypes (bf16 logits, int8/float labels
    are fine); the kernel casts to f32 internally, so narrow dtypes cut HBM
    traffic roughly in proportion to their size.
    """
    B, C, H, W = logits.shape
    HW = H * W
    R0 = -(-HW // _LANE)                    # rows of 128 pixels (ceil)
    R_arr = max(R0, _SUBLANE)               # keep >= 8 rows so tiles stay (8,128)
    HW_arr = R_arr * _LANE

    x = logits.reshape(B, C, HW)
    y = labels.reshape(B, C, HW)
    if HW_arr != HW:
        # Thin pad only up to the next 128-lane row (free when HW % 128 == 0);
        # padded elements are masked out inside the kernel, so no CE bias.
        x = jnp.pad(x, ((0, 0), (0, 0), (0, HW_arr - HW)))
        y = jnp.pad(y, ((0, 0), (0, 0), (0, HW_arr - HW)))
    x = x.reshape(B, C, R_arr, _LANE)
    y = y.reshape(B, C, R_arr, _LANE)

    itemsizes = (jnp.dtype(x.dtype).itemsize, jnp.dtype(y.dtype).itemsize)
    RT = _choose_row_tile(R_arr, C, itemsizes)
    NR = -(-R_arr // RT)                    # row tiles per sample

    # Split the row-tile loop across the two v7x TensorCores when the batch
    # axis alone cannot (B == 1).  Harmless serial split on v5e/v6e; only
    # enabled when the rectangular grid wastes at most ~1/8 of the steps.
    CSPLIT = 2 if (B == 1 and NR >= 2 and (NR % 2 == 0 or NR >= 8)) else 1
    NRH = -(-NR // CSPLIT)
    need_mask = (CSPLIT * NRH * RT * _LANE) > HW

    kernel = _make_kernel(C, RT, NRH, NR, HW, need_mask,
                          float(ink_weight), float(background_weight))

    if CSPLIT * NRH == NR:
        def in_idx(b, c, r):
            return (b, 0, c * NRH + r, 0)
    else:
        def in_idx(b, c, r):
            # clamp the (rare) overrun step onto the last valid tile; its
            # contribution is fully masked out in the kernel.
            return (b, 0, jnp.minimum(c * NRH + r, NR - 1), 0)

    in_spec = pl.BlockSpec((1, C, RT, _LANE), in_idx)
    out_spec = pl.BlockSpec((1, 1, 4 * C, _SUBLANE, _LANE),
                            lambda b, c, r: (b, c, 0, 0, 0))

    parts = pl.pallas_call(
        kernel,
        out_shape=jax.ShapeDtypeStruct((B, CSPLIT, 4 * C, _SUBLANE, _LANE),
                                       jnp.float32),
        grid_spec=pltpu.PrefetchScalarGridSpec(
            num_scalar_prefetch=0,
            grid=(B, CSPLIT, NRH),          # reduction (row-tile) axis last
            in_specs=[in_spec, in_spec],
            out_specs=out_spec),
        compiler_params=pltpu.CompilerParams(
            dimension_semantics=("parallel", "parallel", "arbitrary")),
    )(x, y)

    # ---------------- tiny O(B*C) epilogue in plain JAX ----------------
    ce = jnp.sum(parts[:, :, 0:C]) / jnp.float32(B * C * HW)

    inter = jnp.sum(parts[:, :, C:2 * C], axis=(1, 3, 4))      # (B, C)
    go = jnp.sum(parts[:, :, 2 * C:3 * C], axis=(1, 3, 4))     # (B, C) ground_o
    po = jnp.sum(parts[:, :, 3 * C:4 * C], axis=(1, 3, 4))     # (B, C) pred_o
    denom_o = go + po

    w = 1.0 / (go * go)                     # SQUARE class weights
    infs = jnp.isinf(w)
    w = jnp.where(infs, 0.0, w)
    wmax = jnp.max(w, axis=1, keepdims=True)
    w = w + infs.astype(w.dtype) * wmax

    numer = 2.0 * jnp.sum(inter * w, axis=1) + smooth_nr
    denom = jnp.sum(denom_o * w, axis=1) + smooth_dr
    dice = jnp.mean(1.0 - numer / denom)
    return ce + dice


def reference_loss(logits, labels,
                   ink_weight=INK_WEIGHT,
                   background_weight=BACKGROUND_WEIGHT,
                   smooth_nr=SMOOTH_NR,
                   smooth_dr=SMOOTH_DR):
    """Pure-JAX reference mirroring the PyTorch module semantics."""
    x = logits.astype(jnp.float32)
    y = labels.astype(jnp.float32)

    # CustomWeightedCELoss
    w = y * (ink_weight - background_weight) + background_weight
    ce_elem = jnp.maximum(x, 0.0) - x * y + jnp.log1p(jnp.exp(-jnp.abs(x)))
    ce = jnp.mean(w * ce_elem)

    # GeneralizedDiceLoss (include_background=True, no activation, SQUARE weights)
    red = tuple(range(2, x.ndim))
    inter = jnp.sum(x * y, axis=red)
    go = jnp.sum(y, axis=red)
    po = jnp.sum(x, axis=red)
    denom_o = go + po
    wd = 1.0 / (go * go)
    infs = jnp.isinf(wd)
    wd = jnp.where(infs, 0.0, wd)
    maxv = jnp.max(wd, axis=1, keepdims=True)
    wd = wd + infs.astype(wd.dtype) * maxv
    numer = 2.0 * jnp.sum(inter * wd, axis=1, keepdims=True) + smooth_nr
    denom = jnp.sum(denom_o * wd, axis=1, keepdims=True) + smooth_dr
    dice = jnp.mean(1.0 - numer / denom)
    return ce + dice


if __name__ == "__main__":
    key = jax.random.PRNGKey(0)
    k1, k2 = jax.random.split(key)
    B, C, H, W = 2, 4, 16, 16
    logits = jax.random.normal(k1, (B, C, H, W), dtype=jnp.float32)
    labels = (jax.random.uniform(k2, (B, C, H, W)) > 0.5).astype(jnp.float32)

    loss = jax.block_until_ready(jax.jit(weighted_dice_ce_loss)(logits, labels))
    ref = jax.block_until_ready(reference_loss(logits, labels))

    np.testing.assert_allclose(np.asarray(loss), np.asarray(ref),
                               rtol=1e-4, atol=1e-5)
    print("KERNEL_OK")
</pallas_src>

<mosaic_0001>
module attributes {stable_mosaic.version = 11 : i64} {
  func.func @kernel(%arg0: i32, %arg1: i32, %arg2: i32, %arg3: memref<1x4x8x128xf32, #tpu.memory_space<vmem>>, %arg4: memref<1x4x8x128xf32, #tpu.memory_space<vmem>>, %arg5: memref<1x1x16x8x128xf32, #tpu.memory_space<vmem>>) attributes {dimension_semantics = [#tpu.dimension_semantics<parallel>, #tpu.dimension_semantics<parallel>, #tpu.dimension_semantics<arbitrary>], iteration_bounds = array<i64: 2, 1, 1>, scalar_prefetch = 0 : i64, scratch_operands = 0 : i64, tpu.core_type = #tpu.core_type<tc>, window_params = [{transform_indices = @transform_0, window_bounds = array<i64: 1, 4, 8, 128>}, {transform_indices = @transform_1, window_bounds = array<i64: 1, 4, 8, 128>}, {transform_indices = @transform_2, window_bounds = array<i64: 1, 1, 16, 8, 128>}]} {
    %c0_i32 = arith.constant 0 : i32
    %0 = arith.cmpi eq, %arg2, %c0_i32 : i32
    %1 = arith.extui %0 : i1 to i32
    %c0_i32_0 = arith.constant 0 : i32
    %2 = arith.cmpi ne, %1, %c0_i32_0 : i32
    scf.if %2 {
      %cst_51 = arith.constant 0.000000e+00 : f32
      %72 = vector.broadcast %cst_51 : f32 to vector<1x1x16x8x128xf32>
      %c0_52 = arith.constant 0 : index
      %c0_53 = arith.constant 0 : index
      %c0_54 = arith.constant 0 : index
      %c0_55 = arith.constant 0 : index
      %c0_56 = arith.constant 0 : index
      %73 = vector.load %arg5[%c0_52, %c0_53, %c0_54, %c0_55, %c0_56] : memref<1x1x16x8x128xf32, #tpu.memory_space<vmem>>, vector<1x1x16x8x128xf32>
      tpu.vector_store %arg5[%c0_52, %c0_53, %c0_54, %c0_55, %c0_56], %72 {strides = array<i32>} : memref<1x1x16x8x128xf32, #tpu.memory_space<vmem>>, vector<1x1x16x8x128xf32>,
    } else {
    }
    %c0 = arith.constant 0 : index
    %c0_1 = arith.constant 0 : index
    %c0_2 = arith.constant 0 : index
    %c0_3 = arith.constant 0 : index
    %3 = vector.load %arg3[%c0, %c0_1, %c0_2, %c0_3] : memref<1x4x8x128xf32, #tpu.memory_space<vmem>>, vector<1x4x8x128xf32>
    %4 = vector.shape_cast %3 : vector<1x4x8x128xf32> to vector<4x8x128xf32>
    %c0_4 = arith.constant 0 : index
    %c0_5 = arith.constant 0 : index
    %c0_6 = arith.constant 0 : index
    %c0_7 = arith.constant 0 : index
    %5 = vector.load %arg4[%c0_4, %c0_5, %c0_6, %c0_7] : memref<1x4x8x128xf32, #tpu.memory_space<vmem>>, vector<1x4x8x128xf32>
    %6 = vector.shape_cast %5 : vector<1x4x8x128xf32> to vector<4x8x128xf32>
    %c1_i32 = arith.constant 1 : i32
    %7 = arith.muli %arg1, %c1_i32 : i32
    %8 = arith.addi %7, %arg2 : i32
    %9 = tpu.iota {dimensions = array<i32: 0>} : vector<8x128xi32>
    %10 = tpu.iota {dimensions = array<i32: 1>} : vector<8x128xi32>
    %c8_i32 = arith.constant 8 : i32
    %11 = arith.muli %8, %c8_i32 : i32
    %12 = vector.broadcast %11 : i32 to vector<8x128xi32>
    %13 = arith.addi %12, %9 : vector<8x128xi32>
    %c128_i32 = arith.constant 128 : i32
    %14 = vector.broadcast %c128_i32 : i32 to vector<8x128xi32>
    %15 = arith.muli %13, %14 : vector<8x128xi32>
    %16 = arith.addi %15, %10 : vector<8x128xi32>
    %c256_i32 = arith.constant 256 : i32
    %17 = vector.broadcast %c256_i32 : i32 to vector<8x128xi32>
    %18 = arith.cmpi slt, %16, %17 : vector<8x128xi32>
    %19 = vector.shape_cast %18 : vector<8x128xi1> to vector<1x8x128xi1>
    %cst = arith.constant 0.000000e+00 : f32
    %20 = vector.shape_cast %19 : vector<1x8x128xi1> to vector<1x8x128xi1>
    %21 = vector.broadcast %20 : vector<1x8x128xi1> to vector<4x8x128xi1>
    %22 = vector.broadcast %cst : f32 to vector<4x8x128xf32>
    %23 = arith.select %21, %4, %22 : vector<4x8x128xi1>, vector<4x8x128xf32>
    %cst_8 = arith.constant 0.000000e+00 : f32
    %24 = vector.shape_cast %19 : vector<1x8x128xi1> to vector<1x8x128xi1>
    %25 = vector.broadcast %24 : vector<1x8x128xi1> to vector<4x8x128xi1>
    %26 = vector.broadcast %cst_8 : f32 to vector<4x8x128xf32>
    %27 = arith.select %25, %6, %26 : vector<4x8x128xi1>, vector<4x8x128xf32>
    %cst_9 = arith.constant 9.000000e+00 : f32
    %28 = vector.broadcast %cst_9 : f32 to vector<4x8x128xf32>
    %29 = arith.mulf %27, %28 : vector<4x8x128xf32>
    %cst_10 = arith.constant 1.000000e+00 : f32
    %30 = vector.broadcast %cst_10 : f32 to vector<4x8x128xf32>
    %31 = arith.addf %29, %30 : vector<4x8x128xf32>
    %cst_11 = arith.constant 0.000000e+00 : f32
    %32 = vector.broadcast %cst_11 : f32 to vector<4x8x128xf32>
    %33 = arith.maximumf %23, %32 : vector<4x8x128xf32>
    %34 = arith.mulf %23, %27 : vector<4x8x128xf32>
    %35 = arith.subf %33, %34 : vector<4x8x128xf32>
    %36 = math.absf %23 : vector<4x8x128xf32>
    %cst_12 = arith.constant 0.000000e+00 : f32
    %37 = vector.broadcast %cst_12 : f32 to vector<4x8x128xf32>
    %38 = arith.subf %37, %36 : vector<4x8x128xf32>
    %39 = math.exp %38 : vector<4x8x128xf32>
    %40 = math.log1p %39 : vector<4x8x128xf32>
    %41 = arith.addf %35, %40 : vector<4x8x128xf32>
    %42 = arith.mulf %31, %41 : vector<4x8x128xf32>
    %cst_13 = arith.constant 0.000000e+00 : f32
    %43 = vector.shape_cast %19 : vector<1x8x128xi1> to vector<1x8x128xi1>
    %44 = vector.broadcast %43 : vector<1x8x128xi1> to vector<4x8x128xi1>
    %45 = vector.broadcast %cst_13 : f32 to vector<4x8x128xf32>
    %46 = arith.select %44, %42, %45 : vector<4x8x128xi1>, vector<4x8x128xf32>
    %c0_14 = arith.constant 0 : index
    %c0_15 = arith.constant 0 : index
    %c0_16 = arith.constant 0 : index
    %c0_17 = arith.constant 0 : index
    %c0_18 = arith.constant 0 : index
    %47 = vector.load %arg5[%c0_14, %c0_15, %c0_16, %c0_17, %c0_18] : memref<1x1x16x8x128xf32, #tpu.memory_space<vmem>>, vector<1x1x4x8x128xf32>
    %48 = vector.shape_cast %47 : vector<1x1x4x8x128xf32> to vector<4x8x128xf32>
    %49 = arith.addf %48, %46 : vector<4x8x128xf32>
    %c0_19 = arith.constant 0 : index
    %c0_20 = arith.constant 0 : index
    %c0_21 = arith.constant 0 : index
    %c0_22 = arith.constant 0 : index
    %c0_23 = arith.constant 0 : index
    %50 = vector.load %arg5[%c0_19, %c0_20, %c0_21, %c0_22, %c0_23] : memref<1x1x16x8x128xf32, #tpu.memory_space<vmem>>, vector<1x1x4x8x128xf32>
    %51 = vector.shape_cast %50 : vector<1x1x4x8x128xf32> to vector<4x8x128xf32>
    %52 = vector.shape_cast %49 : vector<4x8x128xf32> to vector<1x1x4x8x128xf32>
    tpu.vector_store %arg5[%c0_19, %c0_20, %c0_21, %c0_22, %c0_23], %52 {strides = array<i32>} : memref<1x1x16x8x128xf32, #tpu.memory_space<vmem>>, vector<1x1x4x8x128xf32>,
    %c0_24 = arith.constant 0 : index
    %c0_25 = arith.constant 0 : index
    %c4 = arith.constant 4 : index
    %c0_26 = arith.constant 0 : index
    %c0_27 = arith.constant 0 : index
    %53 = vector.load %arg5[%c0_24, %c0_25, %c4, %c0_26, %c0_27] : memref<1x1x16x8x128xf32, #tpu.memory_space<vmem>>, vector<1x1x4x8x128xf32>
    %54 = vector.shape_cast %53 : vector<1x1x4x8x128xf32> to vector<4x8x128xf32>
    %55 = arith.mulf %23, %27 : vector<4x8x128xf32>
    %56 = arith.addf %54, %55 : vector<4x8x128xf32>
    %c0_28 = arith.constant 0 : index
    %c0_29 = arith.constant 0 : index
    %c4_30 = arith.constant 4 : index
    %c0_31 = arith.constant 0 : index
    %c0_32 = arith.constant 0 : index
    %57 = vector.load %arg5[%c0_28, %c0_29, %c4_30, %c0_31, %c0_32] : memref<1x1x16x8x128xf32, #tpu.memory_space<vmem>>, vector<1x1x4x8x128xf32>
    %58 = vector.shape_cast %57 : vector<1x1x4x8x128xf32> to vector<4x8x128xf32>
    %59 = vector.shape_cast %56 : vector<4x8x128xf32> to vector<1x1x4x8x128xf32>
    tpu.vector_store %arg5[%c0_28, %c0_29, %c4_30, %c0_31, %c0_32], %59 {strides = array<i32>} : memref<1x1x16x8x128xf32, #tpu.memory_space<vmem>>, vector<1x1x4x8x128xf32>,
    %c0_33 = arith.constant 0 : index
    %c0_34 = arith.constant 0 : index
    %c8 = arith.constant 8 : index
    %c0_35 = arith.constant 0 : index
    %c0_36 = arith.constant 0 : index
    %60 = vector.load %arg5[%c0_33, %c0_34, %c8, %c0_35, %c0_36] : memref<1x1x16x8x128xf32, #tpu.memory_space<vmem>>, vector<1x1x4x8x128xf32>
    %61 = vector.shape_cast %60 : vector<1x1x4x8x128xf32> to vector<4x8x128xf32>
    %62 = arith.addf %61, %27 : vector<4x8x128xf32>
    %c0_37 = arith.constant 0 : index
    %c0_38 = arith.constant 0 : index
    %c8_39 = arith.constant 8 : index
    %c0_40 = arith.constant 0 : index
    %c0_41 = arith.constant 0 : index
    %63 = vector.load %arg5[%c0_37, %c0_38, %c8_39, %c0_40, %c0_41] : memref<1x1x16x8x128xf32, #tpu.memory_space<vmem>>, vector<1x1x4x8x128xf32>
    %64 = vector.shape_cast %63 : vector<1x1x4x8x128xf32> to vector<4x8x128xf32>
    %65 = vector.shape_cast %62 : vector<4x8x128xf32> to vector<1x1x4x8x128xf32>
    tpu.vector_store %arg5[%c0_37, %c0_38, %c8_39, %c0_40, %c0_41], %65 {strides = array<i32>} : memref<1x1x16x8x128xf32, #tpu.memory_space<vmem>>, vector<1x1x4x8x128xf32>,
    %c0_42 = arith.constant 0 : index
    %c0_43 = arith.constant 0 : index
    %c12 = arith.constant 12 : index
    %c0_44 = arith.constant 0 : index
    %c0_45 = arith.constant 0 : index
    %66 = vector.load %arg5[%c0_42, %c0_43, %c12, %c0_44, %c0_45] : memref<1x1x16x8x128xf32, #tpu.memory_space<vmem>>, vector<1x1x4x8x128xf32>
    %67 = vector.shape_cast %66 : vector<1x1x4x8x128xf32> to vector<4x8x128xf32>
    %68 = arith.addf %67, %23 : vector<4x8x128xf32>
    %c0_46 = arith.constant 0 : index
    %c0_47 = arith.constant 0 : index
    %c12_48 = arith.constant 12 : index
    %c0_49 = arith.constant 0 : index
    %c0_50 = arith.constant 0 : index
    %69 = vector.load %arg5[%c0_46, %c0_47, %c12_48, %c0_49, %c0_50] : memref<1x1x16x8x128xf32, #tpu.memory_space<vmem>>, vector<1x1x4x8x128xf32>
    %70 = vector.shape_cast %69 : vector<1x1x4x8x128xf32> to vector<4x8x128xf32>
    %71 = vector.shape_cast %68 : vector<4x8x128xf32> to vector<1x1x4x8x128xf32>
    tpu.vector_store %arg5[%c0_46, %c0_47, %c12_48, %c0_49, %c0_50], %71 {strides = array<i32>} : memref<1x1x16x8x128xf32, #tpu.memory_space<vmem>>, vector<1x1x4x8x128xf32>,
    return
  }
  func.func @transform_0(%arg0: i32, %arg1: i32, %arg2: i32) -> (i32, i32, i32, i32) {
    %c1_i32 = arith.constant 1 : i32
    %0 = arith.muli %arg1, %c1_i32 : i32
    %1 = arith.addi %0, %arg2 : i32
    %c0_i32 = arith.constant 0 : i32
    %c0_i32_0 = arith.constant 0 : i32
    %c0_i32_1 = arith.constant 0 : i32
    return %arg0, %c0_i32, %1, %c0_i32_0 : i32, i32, i32, i32
  }
  func.func @transform_1(%arg0: i32, %arg1: i32, %arg2: i32) -> (i32, i32, i32, i32) {
    %c1_i32 = arith.constant 1 : i32
    %0 = arith.muli %arg1, %c1_i32 : i32
    %1 = arith.addi %0, %arg2 : i32
    %c0_i32 = arith.constant 0 : i32
    %c0_i32_0 = arith.constant 0 : i32
    %c0_i32_1 = arith.constant 0 : i32
    return %arg0, %c0_i32, %1, %c0_i32_0 : i32, i32, i32, i32
  }
  func.func @transform_2(%arg0: i32, %arg1: i32, %arg2: i32) -> (i32, i32, i32, i32, i32) {
    %c0_i32 = arith.constant 0 : i32
    %c0_i32_0 = arith.constant 0 : i32
    %c0_i32_1 = arith.constant 0 : i32
    %c0_i32_2 = arith.constant 0 : i32
    return %arg0, %arg1, %c0_i32, %c0_i32_0, %c0_i32_1 : i32, i32, i32, i32, i32
  }
}

</mosaic_0001>

<llo_original>
// kernel: weighted_dice_ce_loss.1
$region0: #{weighted_dice_ce_loss.1}
  #allocation0 [shape = 'u32[]', space=smem, size = 0x4, offset = 0x4, fixed_abs, tag = 'smem constant byte address 0x4 - core index']
  #allocation1 [shape = 'u32[144,128]{1,0:T(1,128)}', space=vmem, size = 0x12000, scoped, tag = 'internal scratch']
  %s0 = inlined_call_operand.vmem [shape: f32[2,4,8,128], index: 0, kind: input, shape index: {}]
  %s1 = inlined_call_operand.vmem [shape: f32[2,4,8,128], index: 1, kind: input, shape index: {}]
  %s2 = inlined_call_operand.vmem [shape: f32[2,1,16,8,128], index: 2, kind: output, shape index: {}]
  %s3 = sld [smem:[#allocation0]]
  $region45: #{weighted_dice_ce_loss.1} parent=0
    _
  %s5 = ssub.s32 1, %s3
  %s6 = scalar_select 0, %s5, %s3
  loop: start=0, step=1, limit=4
  $region2: #{weighted_dice_ce_loss.1} parent=0 // loop_pre_header
    _
  $region3: #{weighted_dice_ce_loss.1} parent=0 // loop_header
    %s8 = sphi 0, %s12
    %p9 = scmp.ge.s32.totalorder %s8, 4
    %s15 = sphi 0, %s34
    %s16 = sphi 0, %s30
    %s17 = sphi 0, %s26
    %s18 = sphi 0, %s15
    %s19 = sphi 0, %s16
    %s20 = sphi 0, %s17
    %s21 = sphi 0, %s18
    %s22 = sphi 0, %s19
    %s23 = sphi 0, %s20
    %s41 = sphi 0, %s43
    %s44 = sphi 0, %s41
    %s45 = sphi 0, %s44
    %s61 = sphi 0, %s45
    %s71 = sphi 0, %s73
    %s74 = sphi 0, %s71
    %s75 = sphi 0, %s74
    %s91 = sphi 0, %s75
    %s99 = sphi 0, %s101
    %s102 = sphi 0, %s99
    %s103 = sphi 0, %s102
    %s119 = sphi 0, %s103
  $region4: #{weighted_dice_ce_loss.1} parent=0 // loop_header_branch
    %11 = sbr.rel (%p9) target = $region8
  $region5: #{weighted_dice_ce_loss.1} parent=0 // loop_body
    %s13 = ssub.s32 %s8, 1
    %s14 = ssub.s32 %s8, 2
    %s24 = sadd.s32 1, %s17
    %p25 = scmp.ge.s32.totalorder %s24, 1
    %s26 = scalar_select %p25, 0, %s24
    %s27 = sadd.s32 1, %s16
    %s28 = scalar_select %p25, %s27, %s16
    %p29 = scmp.ge.s32.totalorder %s28, 1
    %s30 = scalar_select %p29, 0, %s28
    %s31 = sadd.s32 1, %s15
    %s32 = scalar_select %p29, %s31, %s15
    %p33 = scmp.ge.s32.totalorder %s32, 2
    %s34 = scalar_select %p33, 0, %s32
    %s35 = sadd.s32 %s16, %s17
    %s36 = sadd.s32 %s30, %s26
    %s37 = ssub.s32 %s15, %s34
    %s38 = ssub.s32 %s35, %s36
    %s39 = sor.u32 %s37, %s38
    %p40 = scmp.eq.s32.totalorder %s39, 0
    %s42 = sadd.s32 %s41, 1
    %s43 = scalar_select %p40, %s41, %s42
    %p46 = pneg %p40
    %p47 = scmp.eq.s32.totalorder %s8, 1
    %p48 = por %p46, %p47
    %p49 = scmp.ne.s32.totalorder %s41, %s44
    %p50 = scmp.eq.s32.totalorder %s8, 0
    %p51 = por %p49, %p50
    %p52 = scmp.ne.s32.totalorder %s41, %s44
    %p53 = scmp.eq.s32.totalorder %s13, 1
    %p54 = por %p52, %p53
    %p55 = scmp.ne.s32.totalorder %s44, %s45
    %p56 = scmp.eq.s32.totalorder %s13, 0
    %p57 = por %p55, %p56
    %p58 = scmp.ne.s32.totalorder %s44, %s45
    %p59 = scmp.eq.s32.totalorder %s14, 1
    %p60 = por %p58, %p59
    %p62 = scmp.ne.s32.totalorder %s45, %s61
    %p63 = scmp.eq.s32.totalorder %s14, 0
    %p64 = por %p62, %p63
    %s65 = sadd.s32 %s16, %s17
    %s66 = sadd.s32 %s30, %s26
    %s67 = ssub.s32 %s15, %s34
    %s68 = ssub.s32 %s65, %s66
    %s69 = sor.u32 %s67, %s68
    %p70 = scmp.eq.s32.totalorder %s69, 0
    %s72 = sadd.s32 %s71, 1
    %s73 = scalar_select %p70, %s71, %s72
    %p76 = pneg %p70
    %p77 = scmp.eq.s32.totalorder %s8, 1
    %p78 = por %p76, %p77
    %p79 = scmp.ne.s32.totalorder %s71, %s74
    %p80 = scmp.eq.s32.totalorder %s8, 0
    %p81 = por %p79, %p80
    %p82 = scmp.ne.s32.totalorder %s71, %s74
    %p83 = scmp.eq.s32.totalorder %s13, 1
    %p84 = por %p82, %p83
    %p85 = scmp.ne.s32.totalorder %s74, %s75
    %p86 = scmp.eq.s32.totalorder %s13, 0
    %p87 = por %p85, %p86
    %p88 = scmp.ne.s32.totalorder %s74, %s75
    %p89 = scmp.eq.s32.totalorder %s14, 1
    %p90 = por %p88, %p89
    %p92 = scmp.ne.s32.totalorder %s75, %s91
    %p93 = scmp.eq.s32.totalorder %s14, 0
    %p94 = por %p92, %p93
    %s95 = ssub.s32 %s15, %s34
    %s96 = ssub.s32 %s16, %s30
    %s97 = sor.u32 %s95, %s96
    %p98 = scmp.eq.s32.totalorder %s97, 0
    %s100 = sadd.s32 %s99, 1
    %s101 = scalar_select %p98, %s99, %s100
    %p104 = pneg %p98
    %p105 = scmp.eq.s32.totalorder %s8, 1
    %p106 = por %p104, %p105
    %p107 = scmp.ne.s32.totalorder %s99, %s102
    %p108 = scmp.eq.s32.totalorder %s8, 0
    %p109 = por %p107, %p108
    %p110 = scmp.ne.s32.totalorder %s99, %s102
    %p111 = scmp.eq.s32.totalorder %s13, 1
    %p112 = por %p110, %p111
    %p113 = scmp.ne.s32.totalorder %s102, %s103
    %p114 = scmp.eq.s32.totalorder %s13, 0
    %p115 = por %p113, %p114
    %p116 = scmp.ne.s32.totalorder %s102, %s103
    %p117 = scmp.eq.s32.totalorder %s14, 1
    %p118 = por %p116, %p117
    %p120 = scmp.ne.s32.totalorder %s103, %s119
    %p121 = scmp.eq.s32.totalorder %s14, 0
    %p122 = por %p120, %p121
    %p123 = scmp.le.s32.totalorder 1, %s8
    %p124 = scmp.lt.s32.totalorder %s8, 3
    %p125 = pnand %p123, %p124
    %p126 = pneg %p125
    // Predicated region
    $region9: #{weighted_dice_ce_loss.1} parent=5 // pred_check
      _
    $region10: #{weighted_dice_ce_loss.1} parent=5 // pred_check_branch
      %128 = sbr.rel (%p125) target = $region12
    $region11: #{weighted_dice_ce_loss.1} parent=5 // pred_region
      %s129 = ssub.s32 %s8, 1
    $region12: #{weighted_dice_ce_loss.1} parent=5 // pred_fallthru
      _
    %p130 = scmp.lt.s32.totalorder %s8, 2
    // Predicated region
    $region13: #{weighted_dice_ce_loss.1} parent=5 // pred_check
      %p131 = pneg %p130
    $region14: #{weighted_dice_ce_loss.1} parent=5 // pred_check_branch
      %133 = sbr.rel (%p131) target = $region16
    $region15: #{weighted_dice_ce_loss.1} parent=5 // pred_region
      // Predicated region
      $region17: #{weighted_dice_ce_loss.1} parent=15 // pred_check
        %p134 = pneg %p51
      $region18: #{weighted_dice_ce_loss.1} parent=15 // pred_check_branch
        %136 = sbr.rel (%p134) target = $region20
      $region19: #{weighted_dice_ce_loss.1} parent=15 // pred_region
        %s137 = sadd.s32 %s16, %s17
        %p138 = scmp.lt.s32.totalorder %s15, 1
        %s139 = scalar_select %p138, %s15, 1
        %p140 = scmp.lt.s32.totalorder %s137, 0
        %s141 = scalar_select %p140, %s137, 0
        %s142 = smul.addr %s139, 4
        %s143 = sadd.s32 %s141, %s142
        %s144 = smul.addr %s143, 8
        %s145 = scalar_lea.vmem %s0, %s144
        %s146 = sadd.s32 %s16, %s17
      $region20: #{weighted_dice_ce_loss.1} parent=15 // pred_fallthru
        _
      // Predicated region
      $region21: #{weighted_dice_ce_loss.1} parent=15 // pred_check
        %p147 = pneg %p81
      $region22: #{weighted_dice_ce_loss.1} parent=15 // pred_check_branch
        %149 = sbr.rel (%p147) target = $region24
      $region23: #{weighted_dice_ce_loss.1} parent=15 // pred_region
        %s150 = sadd.s32 %s16, %s17
        %p151 = scmp.lt.s32.totalorder %s15, 1
        %s152 = scalar_select %p151, %s15, 1
        %p153 = scmp.lt.s32.totalorder %s150, 0
        %s154 = scalar_select %p153, %s150, 0
        %s155 = smul.addr %s152, 4
        %s156 = sadd.s32 %s154, %s155
        %s157 = smul.addr %s156, 8
        %s158 = scalar_lea.vmem %s1, %s157
        %s159 = sadd.s32 %s16, %s17
      $region24: #{weighted_dice_ce_loss.1} parent=15 // pred_fallthru
        _
    $region16: #{weighted_dice_ce_loss.1} parent=5 // pred_fallthru
      _
    %p160 = scmp.le.s32.totalorder 1, %s8
    %p161 = scmp.lt.s32.totalorder %s8, 3
    %p162 = pnand %p160, %p161
    %p163 = pneg %p162
    // Predicated region
    $region25: #{weighted_dice_ce_loss.1} parent=5 // pred_check
      _
    $region26: #{weighted_dice_ce_loss.1} parent=5 // pred_check_branch
      %165 = sbr.rel (%p162) target = $region28
    $region27: #{weighted_dice_ce_loss.1} parent=5 // pred_region
      %s166 = ssub.s32 %s8, 1
      %s167 = sadd.s32 %s19, %s20
      %p168 = scmp.lt.s32.totalorder %s18, 1
      %s169 = scalar_select %p168, %s18, 1
      %p170 = scmp.lt.s32.totalorder %s167, 0
      %s171 = scalar_select %p170, %s167, 0
      %s172 = smul.addr %s169, 4
      %s173 = sadd.s32 %s171, %s172
      %s174 = smul.addr %s173, 8
      %s175 = scalar_lea.vmem %s0, %s174
      %p176 = pneg %p57
      %p177 = pneg %p54
      %s178 = sadd.s32 %s19, %s20
      %p179 = scmp.lt.s32.totalorder %s18, 1
      %s180 = scalar_select %p179, %s18, 1
      %p181 = scmp.lt.s32.totalorder %s178, 0
      %s182 = scalar_select %p181, %s178, 0
      %s183 = smul.addr %s180, 4
      %s184 = sadd.s32 %s182, %s183
      %s185 = smul.addr %s184, 8
      %s186 = scalar_lea.vmem %s1, %s185
      %p187 = pneg %p87
      %p188 = pneg %p84
      %p189 = pneg %p115
      %p190 = pneg %p112
      %p191 = scmp.lt.s32.totalorder %s18, 1
      %s192 = scalar_select %p191, %s18, 1
      %p193 = scmp.lt.s32.totalorder %s19, 0
      %s194 = scalar_select %p193, %s19, 0
      %s195 = smul.addr %s194, 16
      %s196 = smul.addr %s192, 16
      %s197 = sadd.s32 %s195, %s196
      %s198 = smul.addr %s197, 8
      %s199 = scalar_lea.vmem %s2, %s198
      %s200 = sadd.s32 %s19, %s20
      %p201 = scmp.lt.s32.totalorder %s18, 1
      %s202 = scalar_select %p201, %s18, 1
      %p203 = scmp.lt.s32.totalorder %s200, 0
      %s204 = scalar_select %p203, %s200, 0
      %s205 = smul.addr %s202, 4
      %s206 = sadd.s32 %s204, %s205
      %s207 = smul.addr %s206, 8
      %s208 = scalar_lea.vmem %s0, %s207
      %s209 = sadd.s32 %s19, %s20
      %s210 = sadd.s32 %s19, %s20
      %p211 = scmp.lt.s32.totalorder %s18, 1
      %s212 = scalar_select %p211, %s18, 1
      %p213 = scmp.lt.s32.totalorder %s210, 0
      %s214 = scalar_select %p213, %s210, 0
      %s215 = smul.addr %s212, 4
      %s216 = sadd.s32 %s214, %s215
      %s217 = smul.addr %s216, 8
      %s218 = scalar_lea.vmem %s1, %s217
      %s219 = sadd.s32 %s19, %s20
      %p220 = scmp.lt.s32.totalorder %s18, 1
      %s221 = scalar_select %p220, %s18, 1
      %p222 = scmp.lt.s32.totalorder %s19, 0
      %s223 = scalar_select %p222, %s19, 0
      %s224 = smul.addr %s223, 16
      %s225 = smul.addr %s221, 16
      %s226 = sadd.s32 %s224, %s225
      %s227 = smul.addr %s226, 8
      %s228 = scalar_lea.vmem %s2, %s227
      %p229 = scmp.eq.s32.totalorder %s20, 0
      // Predicated region
      $region29: #{weighted_dice_ce_loss.1} parent=27 // pred_check
        %p230 = pneg %p229
      $region30: #{weighted_dice_ce_loss.1} parent=27 // pred_check_branch
        %232 = sbr.rel (%p230) target = $region32
      $region31: #{weighted_dice_ce_loss.1} parent=27 // pred_region
        %233 = vst [vmem:[%s228] sm:$0xff] 0.0
        %234 = vst [vmem:[%s228 + $0x8] sm:$0xff] 0.0
        %235 = vst [vmem:[%s228 + $0x10] sm:$0xff] 0.0
        %236 = vst [vmem:[%s228 + $0x18] sm:$0xff] 0.0
        %237 = vst [vmem:[%s228 + $0x20] sm:$0xff] 0.0
        %238 = vst [vmem:[%s228 + $0x28] sm:$0xff] 0.0
        %239 = vst [vmem:[%s228 + $0x30] sm:$0xff] 0.0
        %240 = vst [vmem:[%s228 + $0x38] sm:$0xff] 0.0
        %241 = vst [vmem:[%s228 + $0x40] sm:$0xff] 0.0
        %242 = vst [vmem:[%s228 + $0x48] sm:$0xff] 0.0
        %243 = vst [vmem:[%s228 + $0x50] sm:$0xff] 0.0
        %244 = vst [vmem:[%s228 + $0x58] sm:$0xff] 0.0
        %245 = vst [vmem:[%s228 + $0x60] sm:$0xff] 0.0
        %246 = vst [vmem:[%s228 + $0x68] sm:$0xff] 0.0
        %247 = vst [vmem:[%s228 + $0x70] sm:$0xff] 0.0
        %248 = vst [vmem:[%s228 + $0x78] sm:$0xff] 0.0
      $region32: #{weighted_dice_ce_loss.1} parent=27 // pred_fallthru
        _
      %v249 = vld [vmem:[%s208] sm:$0xff]
      %v250 = vld [vmem:[%s208 + $0x8] sm:$0xff]
      %v251 = vld [vmem:[%s208 + $0x10] sm:$0xff]
      %v252 = vld [vmem:[%s208 + $0x18] sm:$0xff]
      %v253 = vld [vmem:[%s218] sm:$0xff]
      %v254 = vld [vmem:[%s218 + $0x8] sm:$0xff]
      %v255 = vld [vmem:[%s218 + $0x10] sm:$0xff]
      %v256 = vld [vmem:[%s218 + $0x18] sm:$0xff]
      %s257 = sadd.s32 %s19, %s20
      %v258 = vlaneseq
      %v259 = vshrl.u32 %v258, 7
      %v260 = vlaneseq
      %v261 = vand.u32 %v260, 127
      %s262 = smul.u32 %s257, 8
      %v263 = vstv %s262
      %v264 = vadd.s32 %v263, %v259
      %v265 = vmul.u32 %v264, 128
      %v266 = vadd.s32 %v265, %v261
      %vm267 = vcmp.lt.s32.totalorder %v266, 256
      %v268 = vsel %vm267, 1, 0
      %vm269 = vcmp.eq.s32.totalorder %v268, 1
      %v270 = vsel %vm269, %v249, 0.0
      %v271 = vsel %vm269, %v250, 0.0
      %v272 = vsel %vm269, %v251, 0.0
      %v273 = vsel %vm269, %v252, 0.0
      %v274 = vsel %vm269, %v253, 0.0
      %v275 = vsel %vm269, %v254, 0.0
      %v276 = vsel %vm269, %v255, 0.0
      %v277 = vsel %vm269, %v256, 0.0
      %v278 = vmul.f32 %v274, 9.0
      %v279 = vmul.f32 %v275, 9.0
      %v280 = vmul.f32 %v276, 9.0
      %v281 = vmul.f32 %v277, 9.0
      %v282 = vadd.f32 %v278, 1.0
      %v283 = vadd.f32 %v279, 1.0
      %v284 = vadd.f32 %v280, 1.0
      %v285 = vadd.f32 %v281, 1.0
      %v286 = vmax.f32 %v270, 0.0
      %v287 = vmax.f32 %v271, 0.0
      %v288 = vmax.f32 %v272, 0.0
      %v289 = vmax.f32 %v273, 0.0
      %v290 = vmul.f32 %v270, %v274
      %v291 = vmul.f32 %v271, %v275
      %v292 = vmul.f32 %v272, %v276
      %v293 = vmul.f32 %v273, %v277
      %v294 = vsub.f32 %v286, %v290
      %v295 = vsub.f32 %v287, %v291
      %v296 = vsub.f32 %v288, %v292
      %v297 = vsub.f32 %v289, %v293
      %v298 = vand.u32 2147483647, %v270
      %v299 = vand.u32 2147483647, %v271
      %v300 = vand.u32 2147483647, %v272
      %v301 = vand.u32 2147483647, %v273
      %v302 = vsub.f32 0.0, %v298
      %v303 = vsub.f32 0.0, %v299
      %v304 = vsub.f32 0.0, %v300
      %v305 = vsub.f32 0.0, %v301
      %v306 = vmul.f32 %v302, 1.442695
      %v307 = vpow.pop %v306
      %v308 = vmul.f32 %v303, 1.442695
      %v309 = vpow.pop %v308
      %v310 = vmul.f32 %v304, 1.442695
      %v311 = vpow.pop %v310
      %v312 = vmul.f32 %v305, 1.442695
      %v313 = vpow.pop %v312
      %v314 = vadd.f32 %v307, 1.0
      %v315 = vlog2.pop %v314
      %v316 = vmul.f32 %v315, 0.6931472
      %v317 = vmul.f32 -0.5, %v307
      %v318 = vadd.f32 %v317, 1.0
      %v319 = vmul.f32 %v318, %v307
      %v320 = vand.u32 2147483647, %v307
      %vm321 = vcmp.lt.f32.partialorder %v320, 0.0004427343
      %v322 = vsel %vm321, %v319, %v316
      %v323 = vadd.f32 %v309, 1.0
      %v324 = vlog2.pop %v323
      %v325 = vmul.f32 %v324, 0.6931472
      %v326 = vmul.f32 -0.5, %v309
      %v327 = vadd.f32 %v326, 1.0
      %v328 = vmul.f32 %v327, %v309
      %v329 = vand.u32 2147483647, %v309
      %vm330 = vcmp.lt.f32.partialorder %v329, 0.0004427343
      %v331 = vsel %vm330, %v328, %v325
      %v332 = vadd.f32 %v311, 1.0
      %v333 = vlog2.pop %v332
      %v334 = vmul.f32 %v333, 0.6931472
      %v335 = vmul.f32 -0.5, %v311
      %v336 = vadd.f32 %v335, 1.0
      %v337 = vmul.f32 %v336, %v311
      %v338 = vand.u32 2147483647, %v311
      %vm339 = vcmp.lt.f32.partialorder %v338, 0.0004427343
      %v340 = vsel %vm339, %v337, %v334
      %v341 = vadd.f32 %v313, 1.0
      %v342 = vlog2.pop %v341
      %v343 = vmul.f32 %v342, 0.6931472
      %v344 = vmul.f32 -0.5, %v313
      %v345 = vadd.f32 %v344, 1.0
      %v346 = vmul.f32 %v345, %v313
      %v347 = vand.u32 2147483647, %v313
      %vm348 = vcmp.lt.f32.partialorder %v347, 0.0004427343
      %v349 = vsel %vm348, %v346, %v343
      %v350 = vadd.f32 %v294, %v322
      %v351 = vadd.f32 %v295, %v331
      %v352 = vadd.f32 %v296, %v340
      %v353 = vadd.f32 %v297, %v349
      %v354 = vmul.f32 %v282, %v350
      %v355 = vmul.f32 %v283, %v351
      %v356 = vmul.f32 %v284, %v352
      %v357 = vmul.f32 %v285, %v353
      %v358 = vsel %vm269, %v354, 0.0
      %v359 = vsel %vm269, %v355, 0.0
      %v360 = vsel %vm269, %v356, 0.0
      %v361 = vsel %vm269, %v357, 0.0
      %v362 = vld [vmem:[%s228] sm:$0xff]
      %v363 = vld [vmem:[%s228 + $0x8] sm:$0xff]
      %v364 = vld [vmem:[%s228 + $0x10] sm:$0xff]
      %v365 = vld [vmem:[%s228 + $0x18] sm:$0xff]
      %v366 = vadd.f32 %v362, %v358
      %v367 = vadd.f32 %v363, %v359
      %v368 = vadd.f32 %v364, %v360
      %v369 = vadd.f32 %v365, %v361
      %370 = vst [vmem:[%s228] sm:$0xff] %v366
      %371 = vst [vmem:[%s228 + $0x8] sm:$0xff] %v367
      %372 = vst [vmem:[%s228 + $0x10] sm:$0xff] %v368
      %373 = vst [vmem:[%s228 + $0x18] sm:$0xff] %v369
      %s374 = scalar_lea.vmem %s228, 32
      %v375 = vld [vmem:[%s374] sm:$0xff]
      %v376 = vld [vmem:[%s374 + $0x8] sm:$0xff]
      %v377 = vld [vmem:[%s374 + $0x10] sm:$0xff]
      %v378 = vld [vmem:[%s374 + $0x18] sm:$0xff]
      %v379 = vadd.f32 %v375, %v290
      %v380 = vadd.f32 %v376, %v291
      %v381 = vadd.f32 %v377, %v292
      %v382 = vadd.f32 %v378, %v293
      %383 = vst [vmem:[%s374] sm:$0xff] %v379
      %384 = vst [vmem:[%s374 + $0x8] sm:$0xff] %v380
      %385 = vst [vmem:[%s374 + $0x10] sm:$0xff] %v381
      %386 = vst [vmem:[%s374 + $0x18] sm:$0xff] %v382
      %s387 = scalar_lea.vmem %s228, 64
      %v388 = vld [vmem:[%s387] sm:$0xff]
      %v389 = vld [vmem:[%s387 + $0x8] sm:$0xff]
      %v390 = vld [vmem:[%s387 + $0x10] sm:$0xff]
      %v391 = vld [vmem:[%s387 + $0x18] sm:$0xff]
      %v392 = vadd.f32 %v388, %v274
      %v393 = vadd.f32 %v389, %v275
      %v394 = vadd.f32 %v390, %v276
      %v395 = vadd.f32 %v391, %v277
      %396 = vst [vmem:[%s387] sm:$0xff] %v392
      %397 = vst [vmem:[%s387 + $0x8] sm:$0xff] %v393
      %398 = vst [vmem:[%s387 + $0x10] sm:$0xff] %v394
      %399 = vst [vmem:[%s387 + $0x18] sm:$0xff] %v395
      %s400 = scalar_lea.vmem %s228, 96
      %v401 = vld [vmem:[%s400] sm:$0xff]
      %v402 = vld [vmem:[%s400 + $0x8] sm:$0xff]
      %v403 = vld [vmem:[%s400 + $0x10] sm:$0xff]
      %v404 = vld [vmem:[%s400 + $0x18] sm:$0xff]
      %v405 = vadd.f32 %v401, %v270
      %v406 = vadd.f32 %v402, %v271
      %v407 = vadd.f32 %v403, %v272
      %v408 = vadd.f32 %v404, %v273
      %409 = vst [vmem:[%s400] sm:$0xff] %v405
      %410 = vst [vmem:[%s400 + $0x8] sm:$0xff] %v406
      %411 = vst [vmem:[%s400 + $0x10] sm:$0xff] %v407
      %412 = vst [vmem:[%s400 + $0x18] sm:$0xff] %v408
      %p413 = scmp.lt.s32.totalorder %s18, 1
      %s414 = scalar_select %p413, %s18, 1
      %p415 = scmp.lt.s32.totalorder %s19, 0
      %s416 = scalar_select %p415, %s19, 0
      %s417 = smul.addr %s416, 16
      %s418 = smul.addr %s414, 16
      %s419 = sadd.s32 %s417, %s418
      %s420 = smul.addr %s419, 8
      %s421 = scalar_lea.vmem %s2, %s420
      // Predicated region
      $region33: #{weighted_dice_ce_loss.1} parent=27 // pred_check
        %p422 = pneg %p112
      $region34: #{weighted_dice_ce_loss.1} parent=27 // pred_check_branch
        %424 = sbr.rel (%p422) target = $region36
      $region35: #{weighted_dice_ce_loss.1} parent=27 // pred_region
        _
      $region36: #{weighted_dice_ce_loss.1} parent=27 // pred_fallthru
        _
    $region28: #{weighted_dice_ce_loss.1} parent=5 // pred_fallthru
      _
    %p425 = scmp.le.s32.totalorder 2, %s8
    // Predicated region
    $region37: #{weighted_dice_ce_loss.1} parent=5 // pred_check
      %p426 = pneg %p425
    $region38: #{weighted_dice_ce_loss.1} parent=5 // pred_check_branch
      %428 = sbr.rel (%p426) target = $region40
    $region39: #{weighted_dice_ce_loss.1} parent=5 // pred_region
      %s429 = ssub.s32 %s8, 2
      // Predicated region
      $region41: #{weighted_dice_ce_loss.1} parent=39 // pred_check
        %p430 = pneg %p118
      $region42: #{weighted_dice_ce_loss.1} parent=39 // pred_check_branch
        %432 = sbr.rel (%p430) target = $region44
      $region43: #{weighted_dice_ce_loss.1} parent=39 // pred_region
        %p433 = scmp.lt.s32.totalorder %s21, 1
        %s434 = scalar_select %p433, %s21, 1
        %p435 = scmp.lt.s32.totalorder %s22, 0
        %s436 = scalar_select %p435, %s22, 0
        %s437 = smul.addr %s436, 16
        %s438 = smul.addr %s434, 16
        %s439 = sadd.s32 %s437, %s438
        %s440 = smul.addr %s439, 8
        %s441 = scalar_lea.vmem %s2, %s440
      $region44: #{weighted_dice_ce_loss.1} parent=39 // pred_fallthru
        _
    $region40: #{weighted_dice_ce_loss.1} parent=5 // pred_fallthru
      _
  $region6: #{weighted_dice_ce_loss.1} parent=0 // loop_footer
    %s12 = sadd.s32 1, %s8
  $region7: #{weighted_dice_ce_loss.1} parent=0 // loop_footer_branch
    %7 = sbr.rel target = $region3
  $region8: #{weighted_dice_ce_loss.1} parent=0 // loop_exit
    _

</llo_original>
